<compile_context>
chip_gen: v7x
topology: tpu7x:2x2x1
jax: 0.10.0
libtpu: 0.0.40
codegen_flags: <defaults>
</compile_context>

<pallas_src>
import functools

import jax
import jax.numpy as jnp
from jax.experimental import pallas as pl
from jax.experimental.pallas import tpu as pltpu

SHIFT_OFFSET = 1e-6
SOURCE_SCALE = 1.38  # hard-coded coefficient in the module's forward


def _first_argmax_onehot(y):
    """One-hot of the first (lowest-index) per-row maximum, 2-D ops only."""
    b, c = y.shape
    col = jax.lax.broadcasted_iota(jnp.int32, (b, c), 1)
    row_max = jnp.max(y, axis=1, keepdims=True)
    is_max = y == row_max
    # First occurrence of the max (matches jnp.argmax / torch .max index).
    idx = jnp.min(jnp.where(is_max, col, c), axis=1, keepdims=True)
    return (col == idx).astype(jnp.float32)


def mdd_kernel(ys_ref, ysadv_ref, yt_ref, ytadv_ref, out_ref, *, batch, tile_b):
    y_s = ys_ref[...].astype(jnp.float32)
    y_s_adv = ysadv_ref[...].astype(jnp.float32)
    y_t = yt_ref[...].astype(jnp.float32)
    y_t_adv = ytadv_ref[...].astype(jnp.float32)

    tb = y_s.shape[0]
    # Row-validity mask for a possibly-partial last tile.
    row = pl.program_id(0) * tile_b + jax.lax.broadcasted_iota(
        jnp.int32, (tb, 1), 0)
    valid = row < batch

    # ---- source disparity: cross_entropy(y_s_adv, argmax(y_s)) per row ----
    # ce = logsumexp(y_s_adv) - y_s_adv[argmax(y_s)]; logs only on (tb, 1).
    onehot_s = _first_argmax_onehot(y_s)
    z_s = y_s_adv - jnp.max(y_s_adv, axis=1, keepdims=True)
    lse_s = jnp.log(jnp.sum(jnp.exp(z_s), axis=1, keepdims=True))       # (tb,1)
    z_sel_s = jnp.sum(onehot_s * z_s, axis=1, keepdims=True)            # (tb,1)
    source_row = SOURCE_SCALE * (lse_s - z_sel_s)                       # (tb,1)

    # ---- target disparity ----
    # log(min(1 - softmax(y_t_adv)[argmax(y_t)] + eps, 1))
    onehot_t = _first_argmax_onehot(y_t)
    z_t = y_t_adv - jnp.max(y_t_adv, axis=1, keepdims=True)
    p_t = jnp.exp(z_t)                                   # single (tb, C) exp
    denom = jnp.sum(p_t, axis=1, keepdims=True)                          # (tb,1)
    # EUP approximate reciprocal + one Newton step (~f32 accurate, off the VPU).
    inv = pl.reciprocal(denom, approx=True)
    inv = inv * (2.0 - denom * inv)
    p_sel = jnp.sum(onehot_t * p_t, axis=1, keepdims=True) * inv         # (tb,1)
    target_row = jnp.log(jnp.minimum(1.0 - p_sel + SHIFT_OFFSET, 1.0))   # (tb,1)

    # Zero contributions from out-of-range (padded) rows.  Keep this a select
    # (NOT a multiply-by-mask): padded rows may hold Inf/NaN garbage.
    per_row = jnp.where(valid, source_row + target_row, 0.0)             # (tb,1)

    # Single fused per-tile partial sum; the /B happens in the wrapper.
    out_ref[0] = jnp.sum(per_row, axis=0, keepdims=True)                 # (1,1)


def _round8_down(x):
    return (x // 8) * 8


def _round8_up(x):
    return ((x + 7) // 8) * 8


def _choose_tile_b(batch, num_classes, itemsize):
    """Batch tile: ~1 MiB per input block, VMEM-budgeted, megacore-friendly."""
    if batch <= 8:
        return batch  # block equals the full array dims -> layout-legal

    row_bytes = num_classes * itemsize
    # ~1 MiB per input block: HBM-roofline sweet spot for mem-bound kernels.
    tb = max(8, _round8_down((1 << 20) // row_bytes))

    # VMEM live-set cap, v7x-safe (64 MiB physical): 4 inputs x 2 pipeline
    # buffers (input dtype) + ~10 (tb, C) float32 intermediates <= 32 MiB.
    live_per_row = num_classes * (4 * 2 * itemsize + 10 * 4)
    tb = min(tb, max(8, _round8_down((32 << 20) // live_per_row)))

    # Never exceed the (8-padded) batch.
    tb = min(tb, _round8_up(batch))

    # Megacore balance: prefer ~8 grid steps if blocks stay >= ~512 KiB,
    # otherwise at least 2 steps so v7x's second TensorCore gets work.
    cap8 = _round8_up(pl.cdiv(batch, 8))
    if cap8 * row_bytes >= (512 << 10):
        tb = min(tb, cap8)
    else:
        tb = min(tb, _round8_up(pl.cdiv(batch, 2)))
    return max(8, tb)


def mdd_loss(y_s, y_s_adv, y_t, y_t_adv):
    """MDD forward pass. Accepts (B, C) logits in f32 or bf16 (no pre-cast)."""
    B, C = y_s.shape
    itemsize = jnp.dtype(y_s.dtype).itemsize
    tile_b = _choose_tile_b(B, C, itemsize)
    num_tiles = pl.cdiv(B, tile_b)

    kernel = functools.partial(mdd_kernel, batch=B, tile_b=tile_b)
    in_spec = pl.BlockSpec((tile_b, C), lambda i: (i, 0))
    out_spec = pl.BlockSpec((1, 1, 1), lambda i: (i, 0, 0))

    cost = pl.CostEstimate(
        flops=26 * B * C,
        transcendentals=2 * B * C + 3 * B,
        bytes_accessed=4 * B * C * itemsize + num_tiles * 4,
    )

    partials = pl.pallas_call(
        kernel,
        out_shape=jax.ShapeDtypeStruct((num_tiles, 1, 1), jnp.float32),
        grid=(num_tiles,),
        in_specs=[in_spec, in_spec, in_spec, in_spec],
        out_specs=out_spec,
        compiler_params=pltpu.CompilerParams(
            dimension_semantics=("parallel",),
            vmem_limit_bytes=48 * 1024 * 1024,
        ),
        cost_estimate=cost,
    )(y_s, y_s_adv, y_t, y_t_adv)

    # mean(source) + mean(target) == (sum(source) + sum(target)) / B.
    return jnp.sum(partials) * (1.0 / B)


def mdd_loss_ref(y_s, y_s_adv, y_t, y_t_adv):
    """Plain-JAX reference of the same forward pass (computed in f32)."""
    y_s, y_s_adv, y_t, y_t_adv = (x.astype(jnp.float32)
                                  for x in (y_s, y_s_adv, y_t, y_t_adv))
    pred_s = jnp.argmax(y_s, axis=1)
    log_sm_s = jax.nn.log_softmax(y_s_adv, axis=1)
    ce = -jnp.take_along_axis(log_sm_s, pred_s[:, None], axis=1)[:, 0]
    source_loss = SOURCE_SCALE * ce

    pred_t = jnp.argmax(y_t, axis=1)
    sm_t = jax.nn.softmax(y_t_adv, axis=1)
    shifted = jnp.log(jnp.minimum(1.0 - sm_t + SHIFT_OFFSET, 1.0))
    target_loss = jnp.take_along_axis(shifted, pred_t[:, None], axis=1)[:, 0]

    return jnp.mean(source_loss) + jnp.mean(target_loss)


if __name__ == "__main__":
    key = jax.random.PRNGKey(0)

    def run_case(batch, num_classes, dtype, tol):
        ks = jax.random.split(jax.random.fold_in(key, batch * 131 + num_classes), 4)
        args = tuple(
            jax.random.normal(k, (batch, num_classes), jnp.float32).astype(dtype)
            for k in ks)
        loss = mdd_loss(*args)
        jax.block_until_ready(loss)
        ref = mdd_loss_ref(*args)
        assert jnp.allclose(loss, ref, atol=tol, rtol=tol), (
            batch, num_classes, dtype, loss, ref)

    # Small shapes consistent with the module (logits: batch x num_classes).
    run_case(8, 16, jnp.float32, 2e-4)
    # Multi-tile grid with a partial (masked) last tile.
    run_case(20, 16, jnp.float32, 2e-4)
    # Narrow-dtype inputs go straight through (kernel upcasts per tile).
    run_case(20, 16, jnp.bfloat16, 2e-4)

    print("KERNEL_OK")
</pallas_src>

<mosaic_0001>
module attributes {stable_mosaic.version = 11 : i64} {
  func.func @mdd_kernel(%arg0: i32, %arg1: memref<8x16xf32, #tpu.memory_space<vmem>>, %arg2: memref<8x16xf32, #tpu.memory_space<vmem>>, %arg3: memref<8x16xf32, #tpu.memory_space<vmem>>, %arg4: memref<8x16xf32, #tpu.memory_space<vmem>>, %arg5: memref<1x1x1xf32, #tpu.memory_space<vmem>>) attributes {dimension_semantics = [#tpu.dimension_semantics<parallel>], iteration_bounds = array<i64: 1>, scalar_prefetch = 0 : i64, scratch_operands = 0 : i64, tpu.core_type = #tpu.core_type<tc>, window_params = [{transform_indices = @transform_0, window_bounds = array<i64: 8, 16>}, {transform_indices = @transform_1, window_bounds = array<i64: 8, 16>}, {transform_indices = @transform_2, window_bounds = array<i64: 8, 16>}, {transform_indices = @transform_3, window_bounds = array<i64: 8, 16>}, {transform_indices = @transform_4, window_bounds = array<i64: 1, 1, 1>}]} {
    %c0 = arith.constant 0 : index
    %c0_0 = arith.constant 0 : index
    %0 = vector.load %arg1[%c0, %c0_0] : memref<8x16xf32, #tpu.memory_space<vmem>>, vector<8x16xf32>
    %c0_1 = arith.constant 0 : index
    %c0_2 = arith.constant 0 : index
    %1 = vector.load %arg2[%c0_1, %c0_2] : memref<8x16xf32, #tpu.memory_space<vmem>>, vector<8x16xf32>
    %c0_3 = arith.constant 0 : index
    %c0_4 = arith.constant 0 : index
    %2 = vector.load %arg3[%c0_3, %c0_4] : memref<8x16xf32, #tpu.memory_space<vmem>>, vector<8x16xf32>
    %c0_5 = arith.constant 0 : index
    %c0_6 = arith.constant 0 : index
    %3 = vector.load %arg4[%c0_5, %c0_6] : memref<8x16xf32, #tpu.memory_space<vmem>>, vector<8x16xf32>
    %c8_i32 = arith.constant 8 : i32
    %4 = arith.muli %arg0, %c8_i32 : i32
    %5 = tpu.iota {dimensions = array<i32: 0>} : vector<8x1xi32>
    %6 = vector.broadcast %4 : i32 to vector<8x1xi32>
    %7 = arith.addi %6, %5 : vector<8x1xi32>
    %c8_i32_7 = arith.constant 8 : i32
    %8 = vector.broadcast %c8_i32_7 : i32 to vector<8x1xi32>
    %9 = arith.cmpi slt, %7, %8 : vector<8x1xi32>
    %10 = tpu.iota {dimensions = array<i32: 1>} : vector<8x16xi32>
    %cst = arith.constant dense<0xFF800000> : vector<8xf32>
    %11 = vector.multi_reduction <maximumf>, %0, %cst [1] : vector<8x16xf32> to vector<8xf32>
    %12 = vector.shape_cast %11 : vector<8xf32> to vector<8x1xf32>
    %13 = vector.broadcast %12 : vector<8x1xf32> to vector<8x16xf32>
    %14 = arith.cmpf oeq, %0, %13 : vector<8x16xf32>
    %c16_i32 = arith.constant 16 : i32
    %15 = vector.broadcast %c16_i32 : i32 to vector<8x16xi32>
    %16 = arith.select %14, %10, %15 : vector<8x16xi1>, vector<8x16xi32>
    %cst_8 = arith.constant dense<2147483647> : vector<8xi32>
    %17 = vector.multi_reduction <minsi>, %16, %cst_8 [1] : vector<8x16xi32> to vector<8xi32>
    %18 = vector.shape_cast %17 : vector<8xi32> to vector<8x1xi32>
    %19 = vector.broadcast %18 : vector<8x1xi32> to vector<8x16xi32>
    %20 = arith.cmpi eq, %10, %19 : vector<8x16xi32>
    %21 = arith.extui %20 : vector<8x16xi1> to vector<8x16xi32>
    %22 = arith.sitofp %21 : vector<8x16xi32> to vector<8x16xf32>
    %cst_9 = arith.constant dense<0xFF800000> : vector<8xf32>
    %23 = vector.multi_reduction <maximumf>, %1, %cst_9 [1] : vector<8x16xf32> to vector<8xf32>
    %24 = vector.shape_cast %23 : vector<8xf32> to vector<8x1xf32>
    %25 = vector.broadcast %24 : vector<8x1xf32> to vector<8x16xf32>
    %26 = arith.subf %1, %25 : vector<8x16xf32>
    %27 = math.exp %26 : vector<8x16xf32>
    %cst_10 = arith.constant dense<0.000000e+00> : vector<8xf32>
    %28 = vector.multi_reduction <add>, %27, %cst_10 [1] : vector<8x16xf32> to vector<8xf32>
    %29 = vector.shape_cast %28 : vector<8xf32> to vector<8x1xf32>
    %30 = math.log %29 : vector<8x1xf32>
    %31 = arith.mulf %22, %26 : vector<8x16xf32>
    %cst_11 = arith.constant dense<0.000000e+00> : vector<8xf32>
    %32 = vector.multi_reduction <add>, %31, %cst_11 [1] : vector<8x16xf32> to vector<8xf32>
    %33 = vector.shape_cast %32 : vector<8xf32> to vector<8x1xf32>
    %34 = arith.subf %30, %33 : vector<8x1xf32>
    %cst_12 = arith.constant 1.380000e+00 : f32
    %35 = vector.broadcast %cst_12 : f32 to vector<8x1xf32>
    %36 = arith.mulf %35, %34 : vector<8x1xf32>
    %37 = tpu.iota {dimensions = array<i32: 1>} : vector<8x16xi32>
    %cst_13 = arith.constant dense<0xFF800000> : vector<8xf32>
    %38 = vector.multi_reduction <maximumf>, %2, %cst_13 [1] : vector<8x16xf32> to vector<8xf32>
    %39 = vector.shape_cast %38 : vector<8xf32> to vector<8x1xf32>
    %40 = vector.broadcast %39 : vector<8x1xf32> to vector<8x16xf32>
    %41 = arith.cmpf oeq, %2, %40 : vector<8x16xf32>
    %c16_i32_14 = arith.constant 16 : i32
    %42 = vector.broadcast %c16_i32_14 : i32 to vector<8x16xi32>
    %43 = arith.select %41, %37, %42 : vector<8x16xi1>, vector<8x16xi32>
    %cst_15 = arith.constant dense<2147483647> : vector<8xi32>
    %44 = vector.multi_reduction <minsi>, %43, %cst_15 [1] : vector<8x16xi32> to vector<8xi32>
    %45 = vector.shape_cast %44 : vector<8xi32> to vector<8x1xi32>
    %46 = vector.broadcast %45 : vector<8x1xi32> to vector<8x16xi32>
    %47 = arith.cmpi eq, %37, %46 : vector<8x16xi32>
    %48 = arith.extui %47 : vector<8x16xi1> to vector<8x16xi32>
    %49 = arith.sitofp %48 : vector<8x16xi32> to vector<8x16xf32>
    %cst_16 = arith.constant dense<0xFF800000> : vector<8xf32>
    %50 = vector.multi_reduction <maximumf>, %3, %cst_16 [1] : vector<8x16xf32> to vector<8xf32>
    %51 = vector.shape_cast %50 : vector<8xf32> to vector<8x1xf32>
    %52 = vector.broadcast %51 : vector<8x1xf32> to vector<8x16xf32>
    %53 = arith.subf %3, %52 : vector<8x16xf32>
    %54 = math.exp %53 : vector<8x16xf32>
    %cst_17 = arith.constant dense<0.000000e+00> : vector<8xf32>
    %55 = vector.multi_reduction <add>, %54, %cst_17 [1] : vector<8x16xf32> to vector<8xf32>
    %56 = vector.shape_cast %55 : vector<8xf32> to vector<8x1xf32>
    %57 = tpu.reciprocal %56 {approx = true} : vector<8x1xf32> -> vector<8x1xf32>
    %58 = arith.mulf %56, %57 : vector<8x1xf32>
    %cst_18 = arith.constant 2.000000e+00 : f32
    %59 = vector.broadcast %cst_18 : f32 to vector<8x1xf32>
    %60 = arith.subf %59, %58 : vector<8x1xf32>
    %61 = arith.mulf %57, %60 : vector<8x1xf32>
    %62 = arith.mulf %49, %54 : vector<8x16xf32>
    %cst_19 = arith.constant dense<0.000000e+00> : vector<8xf32>
    %63 = vector.multi_reduction <add>, %62, %cst_19 [1] : vector<8x16xf32> to vector<8xf32>
    %64 = vector.shape_cast %63 : vector<8xf32> to vector<8x1xf32>
    %65 = arith.mulf %64, %61 : vector<8x1xf32>
    %cst_20 = arith.constant 1.000000e+00 : f32
    %66 = vector.broadcast %cst_20 : f32 to vector<8x1xf32>
    %67 = arith.subf %66, %65 : vector<8x1xf32>
    %cst_21 = arith.constant 9.99999997E-7 : f32
    %68 = vector.broadcast %cst_21 : f32 to vector<8x1xf32>
    %69 = arith.addf %67, %68 : vector<8x1xf32>
    %cst_22 = arith.constant 1.000000e+00 : f32
    %70 = vector.broadcast %cst_22 : f32 to vector<8x1xf32>
    %71 = arith.minimumf %69, %70 : vector<8x1xf32>
    %72 = math.log %71 : vector<8x1xf32>
    %73 = arith.addf %36, %72 : vector<8x1xf32>
    %cst_23 = arith.constant 0.000000e+00 : f32
    %74 = vector.broadcast %cst_23 : f32 to vector<8x1xf32>
    %75 = arith.select %9, %73, %74 : vector<8x1xi1>, vector<8x1xf32>
    %cst_24 = arith.constant dense<0.000000e+00> : vector<1xf32>
    %76 = vector.multi_reduction <add>, %75, %cst_24 [0] : vector<8x1xf32> to vector<1xf32>
    %77 = vector.shape_cast %76 : vector<1xf32> to vector<1x1xf32>
    %c0_25 = arith.constant 0 : index
    %c0_26 = arith.constant 0 : index
    %c0_27 = arith.constant 0 : index
    %78 = vector.load %arg5[%c0_25, %c0_26, %c0_27] : memref<1x1x1xf32, #tpu.memory_space<vmem>>, vector<1x1x1xf32>
    %79 = vector.shape_cast %78 : vector<1x1x1xf32> to vector<1x1xf32>
    %80 = vector.shape_cast %77 : vector<1x1xf32> to vector<1x1x1xf32>
    tpu.vector_store %arg5[%c0_25, %c0_26, %c0_27], %80 {strides = array<i32>} : memref<1x1x1xf32, #tpu.memory_space<vmem>>, vector<1x1x1xf32>,
    return
  }
  func.func @transform_0(%arg0: i32) -> (i32, i32) {
    %c0_i32 = arith.constant 0 : i32
    %c0_i32_0 = arith.constant 0 : i32
    return %arg0, %c0_i32 : i32, i32
  }
  func.func @transform_1(%arg0: i32) -> (i32, i32) {
    %c0_i32 = arith.constant 0 : i32
    %c0_i32_0 = arith.constant 0 : i32
    return %arg0, %c0_i32 : i32, i32
  }
  func.func @transform_2(%arg0: i32) -> (i32, i32) {
    %c0_i32 = arith.constant 0 : i32
    %c0_i32_0 = arith.constant 0 : i32
    return %arg0, %c0_i32 : i32, i32
  }
  func.func @transform_3(%arg0: i32) -> (i32, i32) {
    %c0_i32 = arith.constant 0 : i32
    %c0_i32_0 = arith.constant 0 : i32
    return %arg0, %c0_i32 : i32, i32
  }
  func.func @transform_4(%arg0: i32) -> (i32, i32, i32) {
    %c0_i32 = arith.constant 0 : i32
    %c0_i32_0 = arith.constant 0 : i32
    %c0_i32_1 = arith.constant 0 : i32
    return %arg0, %c0_i32, %c0_i32_0 : i32, i32, i32
  }
}

</mosaic_0001>

<llo_original>
// kernel: tpu_custom_call.1
$region0: #{tpu_custom_call.1}
  #allocation0 [shape = 'u32[]', space=smem, size = 0x4, offset = 0x4, fixed_abs, tag = 'smem constant byte address 0x4 - core index']
  #allocation1 [shape = 'u32[144,128]{1,0:T(1,128)}', space=vmem, size = 0x12000, scoped, tag = 'internal scratch']
  %s0 = inlined_call_operand.hbm [shape: f32[8,16], index: 0, kind: input, shape index: {}]
  %s1 = inlined_call_operand.hbm [shape: f32[8,16], index: 1, kind: input, shape index: {}]
  %s2 = inlined_call_operand.hbm [shape: f32[8,16], index: 2, kind: input, shape index: {}]
  %s3 = inlined_call_operand.vmem [shape: f32[8,16], index: 3, kind: input, shape index: {}]
  %s4 = inlined_call_operand.hbm [shape: f32[1,1,1], index: 4, kind: output, shape index: {}]
  %s5 = sld [smem:[#allocation0]]
  $region38: #{tpu_custom_call.1} parent=0
    _
  %s7 = ssub.s32 1, %s5
  %s8 = scalar_select 0, %s7, %s5
  $region1: #{tpu_custom_call.1} parent=0
    #allocation2 [shape = 'u8[4096]{0}', space=vmem, size = 0x1000, scoped, tag = 'input window, operand 0, single buffered']
    #allocation3 [shape = 's32[1]{0}', space=sflag, size = 0x4, scoped, tag = 'scoped memory for tpu_custom_call.1']
    #allocation4 [shape = 's32[1]{0}', space=sflag, size = 0x4, scoped, tag = 'scoped memory for tpu_custom_call.1']
    #allocation5 [shape = 'u8[4096]{0}', space=vmem, size = 0x1000, scoped, tag = 'input window, operand 1, single buffered']
    #allocation6 [shape = 's32[1]{0}', space=sflag, size = 0x4, scoped, tag = 'scoped memory for tpu_custom_call.1']
    #allocation7 [shape = 'u8[4096]{0}', space=vmem, size = 0x1000, scoped, tag = 'input window, operand 2, single buffered']
    #allocation8 [shape = 'u8[512]{0}', space=vmem, size = 0x400, scoped, tag = 'output window, operand 0, single buffered']
    %9 = vsyncpa [#allocation3], 0
    %10 = vsyncpa [#allocation6], 0
    %11 = vsyncpa [#allocation4], 0
    // Predicated region
    $region2: #{tpu_custom_call.1} parent=1 // pred_check
      _
    $region3: #{tpu_custom_call.1} parent=1 // pred_check_branch
      %13 = sbr.rel (0) target = $region5
    $region4: #{tpu_custom_call.1} parent=1 // pred_region
      %s15 = ssub.s32 128, 128
      %16 = vsyncadd [#allocation3], %s15
      %s18 = sshll.u32 [#allocation2], 4
      %s19 = int_to_ptr.vmem [resolvable:$true] %s18
      %21 = dma.hbm_to_vmem [thread:$0]  %s0, 128, %s19, [#allocation3]
    $region5: #{tpu_custom_call.1} parent=1 // pred_fallthru
      _
    // Predicated region
    $region6: #{tpu_custom_call.1} parent=1 // pred_check
      _
    $region7: #{tpu_custom_call.1} parent=1 // pred_check_branch
      %23 = sbr.rel (0) target = $region9
    $region8: #{tpu_custom_call.1} parent=1 // pred_region
      %s25 = ssub.s32 128, 128
      %26 = vsyncadd [#allocation6], %s25
      %s28 = sshll.u32 [#allocation5], 4
      %s29 = int_to_ptr.vmem [resolvable:$true] %s28
      %31 = dma.hbm_to_vmem [thread:$0]  %s1, 128, %s29, [#allocation6]
    $region9: #{tpu_custom_call.1} parent=1 // pred_fallthru
      _
    // Predicated region
    $region10: #{tpu_custom_call.1} parent=1 // pred_check
      _
    $region11: #{tpu_custom_call.1} parent=1 // pred_check_branch
      %33 = sbr.rel (0) target = $region13
    $region12: #{tpu_custom_call.1} parent=1 // pred_region
      %s35 = ssub.s32 128, 128
      %36 = vsyncadd [#allocation6], %s35
      %s38 = sshll.u32 [#allocation7], 4
      %s39 = int_to_ptr.vmem [resolvable:$true] %s38
      %41 = dma.hbm_to_vmem [thread:$0]  %s2, 128, %s39, [#allocation6]
    $region13: #{tpu_custom_call.1} parent=1 // pred_fallthru
      _
    // Predicated region
    $region14: #{tpu_custom_call.1} parent=1 // pred_check
      _
    $region15: #{tpu_custom_call.1} parent=1 // pred_check_branch
      %43 = sbr.rel (0) target = $region17
    $region16: #{tpu_custom_call.1} parent=1 // pred_region
      _
    $region17: #{tpu_custom_call.1} parent=1 // pred_fallthru
      _
    // Predicated region
    $region18: #{tpu_custom_call.1} parent=1 // pred_check
      _
    $region19: #{tpu_custom_call.1} parent=1 // pred_check_branch
      %45 = sbr.rel (0) target = $region21
    $region20: #{tpu_custom_call.1} parent=1 // pred_region
      %46 = dma.done [#allocation3], 128
    $region21: #{tpu_custom_call.1} parent=1 // pred_fallthru
      _
    // Predicated region
    $region22: #{tpu_custom_call.1} parent=1 // pred_check
      _
    $region23: #{tpu_custom_call.1} parent=1 // pred_check_branch
      %48 = sbr.rel (0) target = $region25
    $region24: #{tpu_custom_call.1} parent=1 // pred_region
      %49 = dma.done [#allocation6], 128
    $region25: #{tpu_custom_call.1} parent=1 // pred_fallthru
      _
    // Predicated region
    $region26: #{tpu_custom_call.1} parent=1 // pred_check
      _
    $region27: #{tpu_custom_call.1} parent=1 // pred_check_branch
      %51 = sbr.rel (0) target = $region29
    $region28: #{tpu_custom_call.1} parent=1 // pred_region
      %52 = dma.done [#allocation6], 128
    $region29: #{tpu_custom_call.1} parent=1 // pred_fallthru
      _
    %v53 = vld [vmem:[#allocation2] sm:$0xff]
    %v54 = vld [vmem:[#allocation5] sm:$0xff]
    %v55 = vld [vmem:[#allocation7] sm:$0xff]
    %v56 = vld [vmem:[%s3] sm:$0xff]
    %s57 = smul.u32 0, 8
    %v58 = vlaneseq
    %v59 = vshrl.u32 %v58, 7
    %v60 = vstv %s57
    %v61 = vadd.s32 %v60, %v59
    %vm62 = vcmp.lt.s32.totalorder %v61, 8
    %v63 = vlaneseq
    %v64 = vand.u32 %v63, 127
    %vm65 = vcmask 130048
    %v66 = vsel %vm65, %v53, -inf
    %67 = vmax.xlane.f32.xlu0 %v66
    %v68 = vpop.xlane.xlu0 %67
    %vm69 = vcmp.eq.f32.partialorder %v53, %v68
    %v70 = vsel %vm69, %v64, 16
    %v71 = vsel %vm65, %v70, 2147483647
    %v72 = vand.u32 %v71, 65535
    %v73 = vshra.s32 %v71, 16
    %v74 = vcvt.s32.f32 %v72
    %v75 = vcvt.s32.f32 %v73
    %76 = vmin.xlane.f32.xlu0 %v75
    %v77 = vpop.xlane.xlu0 %76
    %vm78 = vcmp.eq.f32.partialorder %v75, %v77
    %v79 = vsel %vm78, %v74, inf
    %80 = vmin.xlane.f32.xlu0 %v79
    %v81 = vpop.xlane.xlu0 %80
    %v82 = vcvt.f32.s32 %v81
    %v83 = vcvt.f32.s32 %v77
    %v84 = vshll.u32 %v83, 16
    %v85 = vadd.s32 %v84, %v82
    %vm86 = vcmp.eq.s32.totalorder %v64, %v85
    %v87 = vsel %vm86, 1, 0
    %v88 = vcvt.s32.f32 %v87
    %v89 = vsel %vm65, %v54, -inf
    %90 = vmax.xlane.f32.xlu0 %v89
    %v91 = vpop.xlane.xlu0 %90
    %v92 = vsub.f32 %v54, %v91
    %v93 = vmul.f32 %v92, 1.442695
    %v94 = vpow.pop %v93
    %v95 = vsel %vm65, %v94, 0.0
    %96 = vadd.xlane.f32.xlu0 %v95
    %v97 = vpop.xlane.xlu0 %96
    %v98 = vlog2.pop %v97
    %v99 = vmul.f32 %v98, 0.6931472
    %v100 = vmul.f32 %v88, %v92
    %v101 = vsel %vm65, %v100, 0.0
    %102 = vadd.xlane.f32.xlu0 %v101
    %v103 = vpop.xlane.xlu0 %102
    %v104 = vsub.f32 %v99, %v103
    %v105 = vmul.f32 %v104, 1.38
    %v106 = vsel %vm65, %v55, -inf
    %107 = vmax.xlane.f32.xlu0 %v106
    %v108 = vpop.xlane.xlu0 %107
    %vm109 = vcmp.eq.f32.partialorder %v55, %v108
    %v110 = vsel %vm109, %v64, 16
    %v111 = vsel %vm65, %v110, 2147483647
    %v112 = vand.u32 %v111, 65535
    %v113 = vshra.s32 %v111, 16
    %v114 = vcvt.s32.f32 %v112
    %v115 = vcvt.s32.f32 %v113
    %116 = vmin.xlane.f32.xlu0 %v115
    %v117 = vpop.xlane.xlu0 %116
    %vm118 = vcmp.eq.f32.partialorder %v115, %v117
    %v119 = vsel %vm118, %v114, inf
    %120 = vmin.xlane.f32.xlu0 %v119
    %v121 = vpop.xlane.xlu0 %120
    %v122 = vcvt.f32.s32 %v121
    %v123 = vcvt.f32.s32 %v117
    %v124 = vshll.u32 %v123, 16
    %v125 = vadd.s32 %v124, %v122
    %vm126 = vcmp.eq.s32.totalorder %v64, %v125
    %v127 = vsel %vm126, 1, 0
    %v128 = vcvt.s32.f32 %v127
    %v129 = vsel %vm65, %v56, -inf
    %130 = vmax.xlane.f32.xlu0 %v129
    %v131 = vpop.xlane.xlu0 %130
    %v132 = vsub.f32 %v56, %v131
    %v133 = vmul.f32 %v132, 1.442695
    %v134 = vpow.pop %v133
    %v135 = vsel %vm65, %v134, 0.0
    %136 = vadd.xlane.f32.xlu0 %v135
    %v137 = vpop.xlane.xlu0 %136
    %v138 = vrcp.pop %v137
    %v139 = vmul.f32 %v137, %v138
    %v140 = vsub.f32 2.0, %v139
    %v141 = vmul.f32 %v138, %v140
    %v142 = vmul.f32 %v128, %v134
    %v143 = vsel %vm65, %v142, 0.0
    %144 = vadd.xlane.f32.xlu0 %v143
    %v145 = vpop.xlane.xlu0 %144
    %v146 = vmul.f32 %v145, %v141
    %v147 = vsub.f32 1.0, %v146
    %v148 = vadd.f32 %v147, 1e-06
    %v149 = vmin.f32 %v148, 1.0
    %v150 = vlog2.pop %v149
    %v151 = vmul.f32 %v150, 0.6931472
    %v152 = vadd.f32 %v105, %v151
    %v153 = vsel %vm62, %v152, 0.0
    %v154 = vrot.slane %v153, 4
    %v155 = vadd.f32 %v153, %v154
    %v156 = vrot.slane %v155, 2
    %v157 = vadd.f32 %v155, %v156
    %v158 = vrot.slane %v157, 1
    %v159 = vadd.f32 %v157, %v158
    %vm160 = vcmask 0
    %161 = vst.msk [vmem:[#allocation8] sm:$0x1] %vm160, %v159
    // Predicated region
    $region30: #{tpu_custom_call.1} parent=1 // pred_check
      _
    $region31: #{tpu_custom_call.1} parent=1 // pred_check_branch
      %163 = sbr.rel (0) target = $region33
    $region32: #{tpu_custom_call.1} parent=1 // pred_region
      %s165 = ssub.s32 16, 16
      %166 = vsyncadd [#allocation4], %s165
      %s168 = sshll.u32 [#allocation8], 4
      %s169 = int_to_ptr.vmem [resolvable:$true] %s168
      %171 = dma.vmem_to_hbm [thread:$0]  %s169, 16, %s4, [#allocation4]
    $region33: #{tpu_custom_call.1} parent=1 // pred_fallthru
      _
    // Predicated region
    $region34: #{tpu_custom_call.1} parent=1 // pred_check
      _
    $region35: #{tpu_custom_call.1} parent=1 // pred_check_branch
      %173 = sbr.rel (0) target = $region37
    $region36: #{tpu_custom_call.1} parent=1 // pred_region
      %174 = dma.done [#allocation4], 16
    $region37: #{tpu_custom_call.1} parent=1 // pred_fallthru
      _
    %175 = vsyncpa [#allocation3], 1
    %176 = vsyncpa [#allocation6], 1
    %177 = vsyncpa [#allocation4], 1

</llo_original>
